<compile_context>
chip_gen: v6e
topology: v6e:2x2x1
jax: 0.10.0
libtpu: 0.0.40
codegen_flags: <defaults>
</compile_context>

<pallas_src>
import jax
import jax.numpy as jnp
from jax.experimental import pallas as pl
from jax.experimental.pallas import tpu as pltpu


def _spatial_dropout_kernel(x_ref, m_ref, o_ref):
    """x_ref: (TB, C, TD) or (C, TD); m_ref: (TB, 1, TD) or (1, TD).

    m holds {0, 1/(1-p)} in x.dtype, so the whole op is one broadcast mul.
    """
    o_ref[...] = x_ref[...] * m_ref[...]


def _vmem_capacity_bytes() -> int:
    try:
        return int(pltpu.get_tpu_info().vmem_capacity_bytes)
    except Exception:
        return 64 * 1024 * 1024  # conservative fallback (v7x per-TC physical)


def _choose_tiles(B: int, C: int, D: int, itemsize: int, vmem_bytes: int):
    """Pick (TB, TD): ~1-6 MiB per x block, lane tile a multiple of 128 or D."""
    # Per-x-block byte target; keeps 2x(in)+2x(out) double-buffered blocks
    # at <= ~1/4 of physical VMEM on every generation.
    target = int(max(1 << 20, min(6 << 20, vmem_bytes // 16)))

    row_bytes = C * itemsize
    if D * row_bytes <= target:
        td = D                                        # full D (layout rule ok)
    else:
        td = max(128, (target // max(row_bytes, 1)) // 128 * 128)
        td = min(td, D)                               # multiple of 128, <= D

    block_bytes = td * row_bytes
    tb = int(max(1, min(B, target // max(block_bytes, 1))))

    # v7x has two TensorCores: avoid collapsing a non-trivial tensor into a
    # single grid step (one core would idle).
    steps = pl.cdiv(B, tb) * pl.cdiv(D, td)
    if steps < 2 and B * C * D * itemsize >= (2 << 20):
        if tb > 1:
            tb = -(-B // 2)                           # ceil(B / 2)
        elif D > 128:
            half = ((-(-D // 2) + 127) // 128) * 128  # ceil(D/2) -> 128-mult
            if half < D:
                td = half

    return tb, td


def spatial_dropout(x: jax.Array,
                    *,
                    dropout_probability: float = 0.15,
                    key: jax.Array | None = None,
                    seed: int = 0,
                    training: bool = True,
                    donate_x: bool = False) -> jax.Array:
    """SpatialDropout forward. x: (B, C, D)."""
    if not training or dropout_probability <= 0.0:
        return x
    p = float(dropout_probability)
    if p >= 1.0:
        return jnp.zeros_like(x)

    B, C, D = x.shape
    if key is None:
        key = jax.random.PRNGKey(seed)

    # One Bernoulli(keep = 1-p) per (b, d); the mask already carries the
    # 1/(1-p) survivor scale and is cast to x.dtype once (the kernel
    # multiplies in the native dtype — no full-tensor f32 upcast).
    keep = jax.random.bernoulli(key, 1.0 - p, (B, 1, D))
    scale = jnp.asarray(1.0 / (1.0 - p), dtype=x.dtype)
    mask = jnp.where(keep, scale, jnp.zeros((), dtype=x.dtype)).astype(x.dtype)

    itemsize = x.dtype.itemsize
    vmem_bytes = _vmem_capacity_bytes()
    tb, td = _choose_tiles(B, C, D, itemsize, vmem_bytes)

    # Actual double-buffered VMEM footprint (in + out x blocks + mask blocks),
    # used to set the scoped-VMEM limit with headroom.
    x_block_bytes = tb * C * td * itemsize
    m_block_bytes = tb * 1 * td * itemsize
    footprint = 2 * (2 * x_block_bytes + m_block_bytes)
    vmem_limit = int(min(3 * vmem_bytes // 4,
                         max(32 << 20, footprint + (8 << 20))))

    # Squeeze the unit batch dim when TB == 1 so the kernel sees lane-dense
    # 2-D (C, TD) refs; otherwise keep 3-D (TB, C, TD) blocks.
    if tb == 1:
        x_block = (None, C, td)
        m_block = (None, 1, td)
    else:
        x_block = (tb, C, td)
        m_block = (tb, 1, td)
    idx = lambda b, d: (b, 0, d)

    call_kwargs = {}
    if donate_x:
        # Alias x to the output: halves peak HBM footprint when the caller
        # donates x (does not change read+write traffic).
        call_kwargs["input_output_aliases"] = {0: 0}

    return pl.pallas_call(
        _spatial_dropout_kernel,
        out_shape=jax.ShapeDtypeStruct((B, C, D), x.dtype),
        grid=(pl.cdiv(B, tb), pl.cdiv(D, td)),
        in_specs=[
            pl.BlockSpec(x_block, idx),   # x tile
            pl.BlockSpec(m_block, idx),   # mask tile
        ],
        out_specs=pl.BlockSpec(x_block, idx),
        compiler_params=pltpu.CompilerParams(
            dimension_semantics=("parallel", "parallel"),
            vmem_limit_bytes=vmem_limit),
        **call_kwargs,
    )(x, mask)


class SpatialDropout:
    """Mirror of the PyTorch module (default shape permutation (0, 2, 1))."""

    def __init__(self, dropout_probability: float = 0.15, shape=None):
        if shape is None:
            shape = (0, 2, 1)
        assert tuple(shape) == (0, 2, 1), "kernel implements the default permutation"
        self.p = dropout_probability

    def __call__(self, x, *, key=None, seed: int = 0, training: bool = True,
                 donate_x: bool = False):
        return spatial_dropout(x, dropout_probability=self.p, key=key,
                               seed=seed, training=training, donate_x=donate_x)


def _check(x, y, p):
    """Each (b, d) column of y is either all-zero or exactly x[b,:,d]/(1-p)."""
    y_np = jax.device_get(y)
    x_np = jax.device_get(x)
    scale = 1.0 / (1.0 - p)
    col_dropped = (y_np == 0.0).all(axis=1)                  # (B, D) — test-only heuristic
    expected = x_np * scale * (~col_dropped)[:, None, :]
    assert y_np.shape == x_np.shape
    assert bool(jnp.allclose(y_np, expected, rtol=1e-5, atol=1e-6))


if __name__ == "__main__":
    p = 0.15
    module = SpatialDropout(dropout_probability=p)

    # Case 1: small (B, C, D) consistent with the module — exercises TB > 1.
    B, C, D = 2, 4, 16
    x = jax.random.normal(jax.random.PRNGKey(0), (B, C, D), dtype=jnp.float32)
    y = jax.block_until_ready(module(x, key=jax.random.PRNGKey(1234), training=True))
    _check(x, y, p)

    # Case 2: B=1 exercises the squeezed-leading-dim (2-D block) path.
    x2 = jax.random.normal(jax.random.PRNGKey(2), (1, 8, 200), dtype=jnp.float32)
    y2 = jax.block_until_ready(module(x2, key=jax.random.PRNGKey(7), training=True))
    _check(x2, y2, p)

    # Eval mode is identity.
    y_eval = jax.block_until_ready(module(x, training=False))
    assert bool(jnp.allclose(y_eval, x))

    print("KERNEL_OK")
</pallas_src>

<mosaic_0001>
module attributes {stable_mosaic.version = 11 : i64} {
  func.func @_spatial_dropout_kernel(%arg0: i32, %arg1: i32, %arg2: memref<2x4x16xf32, #tpu.memory_space<vmem>>, %arg3: memref<2x1x16xf32, #tpu.memory_space<vmem>>, %arg4: memref<2x4x16xf32, #tpu.memory_space<vmem>>) attributes {dimension_semantics = [#tpu.dimension_semantics<parallel>, #tpu.dimension_semantics<parallel>], iteration_bounds = array<i64: 1, 1>, scalar_prefetch = 0 : i64, scratch_operands = 0 : i64, tpu.core_type = #tpu.core_type<tc>, window_params = [{transform_indices = @transform_0, window_bounds = array<i64: 2, 4, 16>}, {transform_indices = @transform_1, window_bounds = array<i64: 2, 1, 16>}, {transform_indices = @transform_2, window_bounds = array<i64: 2, 4, 16>}]} {
    %c0 = arith.constant 0 : index
    %c0_0 = arith.constant 0 : index
    %c0_1 = arith.constant 0 : index
    %0 = vector.load %arg2[%c0, %c0_0, %c0_1] : memref<2x4x16xf32, #tpu.memory_space<vmem>>, vector<2x4x16xf32>
    %c0_2 = arith.constant 0 : index
    %c0_3 = arith.constant 0 : index
    %c0_4 = arith.constant 0 : index
    %1 = vector.load %arg3[%c0_2, %c0_3, %c0_4] : memref<2x1x16xf32, #tpu.memory_space<vmem>>, vector<2x1x16xf32>
    %2 = vector.broadcast %1 : vector<2x1x16xf32> to vector<2x4x16xf32>
    %3 = arith.mulf %0, %2 : vector<2x4x16xf32>
    %c0_5 = arith.constant 0 : index
    %c0_6 = arith.constant 0 : index
    %c0_7 = arith.constant 0 : index
    %4 = vector.load %arg4[%c0_5, %c0_6, %c0_7] : memref<2x4x16xf32, #tpu.memory_space<vmem>>, vector<2x4x16xf32>
    tpu.vector_store %arg4[%c0_5, %c0_6, %c0_7], %3 {strides = array<i32>} : memref<2x4x16xf32, #tpu.memory_space<vmem>>, vector<2x4x16xf32>,
    return
  }
  func.func @transform_0(%arg0: i32, %arg1: i32) -> (i32, i32, i32) {
    %c0_i32 = arith.constant 0 : i32
    %c0_i32_0 = arith.constant 0 : i32
    return %arg0, %c0_i32, %arg1 : i32, i32, i32
  }
  func.func @transform_1(%arg0: i32, %arg1: i32) -> (i32, i32, i32) {
    %c0_i32 = arith.constant 0 : i32
    %c0_i32_0 = arith.constant 0 : i32
    return %arg0, %c0_i32, %arg1 : i32, i32, i32
  }
  func.func @transform_2(%arg0: i32, %arg1: i32) -> (i32, i32, i32) {
    %c0_i32 = arith.constant 0 : i32
    %c0_i32_0 = arith.constant 0 : i32
    return %arg0, %c0_i32, %arg1 : i32, i32, i32
  }
}

</mosaic_0001>

<llo_original>
// kernel: tpu_custom_call.1
$region0: #{tpu_custom_call.1}
  #allocation0 [shape = 'u32[]', space=smem, size = 0x4, offset = 0x4, fixed_abs, tag = 'smem constant byte address 0x4 - core index']
  #allocation1 [shape = 'u32[144,128]{1,0:T(1,128)}', space=vmem, size = 0x12000, scoped, tag = 'internal scratch']
  %s0 = inlined_call_operand.hbm [shape: f32[2,4,16], index: 0, kind: input, shape index: {}]
  %s1 = inlined_call_operand.hbm [shape: f32[2,1,16], index: 1, kind: input, shape index: {}]
  %s2 = inlined_call_operand.hbm [shape: f32[2,4,16], index: 2, kind: output, shape index: {}]
  %s3 = sld [smem:[#allocation0]]
  $region26: #{tpu_custom_call.1} parent=0
    _
  %s5 = ssub.s32 1, %s3
  %s6 = scalar_select 0, %s5, %s3
  $region1: #{tpu_custom_call.1} parent=0
    #allocation2 [shape = 'u8[4096]{0}', space=vmem, size = 0x1000, scoped, tag = 'input window, operand 0, single buffered']
    #allocation3 [shape = 's32[1]{0}', space=sflag, size = 0x4, scoped, tag = 'scoped memory for tpu_custom_call.1']
    #allocation4 [shape = 's32[1]{0}', space=sflag, size = 0x4, scoped, tag = 'scoped memory for tpu_custom_call.1']
    #allocation5 [shape = 'u8[1024]{0}', space=vmem, size = 0x400, scoped, tag = 'input window, operand 1, single buffered']
    #allocation6 [shape = 's32[1]{0}', space=sflag, size = 0x4, scoped, tag = 'scoped memory for tpu_custom_call.1']
    #allocation7 [shape = 'u8[4096]{0}', space=vmem, size = 0x1000, scoped, tag = 'output window, operand 0, single buffered']
    %7 = vsyncpa [#allocation3], 0
    %8 = vsyncpa [#allocation6], 0
    %9 = vsyncpa [#allocation4], 0
    // Predicated region
    $region2: #{tpu_custom_call.1} parent=1 // pred_check
      _
    $region3: #{tpu_custom_call.1} parent=1 // pred_check_branch
      %11 = sbr.rel (0) target = $region5
    $region4: #{tpu_custom_call.1} parent=1 // pred_region
      %s13 = ssub.s32 128, 128
      %14 = vsyncadd [#allocation3], %s13
      %s15 = sshll.u32 [#allocation2], 4
      %s16 = int_to_ptr.vmem [resolvable:$true] %s15
      %21 = dma.hbm_to_vmem [thread:$0]  %s0, 128, %s16, [#allocation3], 64, 64, 4
    $region5: #{tpu_custom_call.1} parent=1 // pred_fallthru
      _
    // Predicated region
    $region6: #{tpu_custom_call.1} parent=1 // pred_check
      _
    $region7: #{tpu_custom_call.1} parent=1 // pred_check_branch
      %23 = sbr.rel (0) target = $region9
    $region8: #{tpu_custom_call.1} parent=1 // pred_region
      %s25 = ssub.s32 32, 32
      %26 = vsyncadd [#allocation6], %s25
      %s27 = sshll.u32 [#allocation5], 4
      %s28 = int_to_ptr.vmem [resolvable:$true] %s27
      %33 = dma.hbm_to_vmem [thread:$0]  %s1, 32, %s28, [#allocation6], 16, 16, 1
    $region9: #{tpu_custom_call.1} parent=1 // pred_fallthru
      _
    // Predicated region
    $region10: #{tpu_custom_call.1} parent=1 // pred_check
      _
    $region11: #{tpu_custom_call.1} parent=1 // pred_check_branch
      %35 = sbr.rel (0) target = $region13
    $region12: #{tpu_custom_call.1} parent=1 // pred_region
      %36 = dma.done [#allocation3], 128
    $region13: #{tpu_custom_call.1} parent=1 // pred_fallthru
      _
    // Predicated region
    $region14: #{tpu_custom_call.1} parent=1 // pred_check
      _
    $region15: #{tpu_custom_call.1} parent=1 // pred_check_branch
      %38 = sbr.rel (0) target = $region17
    $region16: #{tpu_custom_call.1} parent=1 // pred_region
      %39 = dma.done [#allocation6], 32
    $region17: #{tpu_custom_call.1} parent=1 // pred_fallthru
      _
    %v40 = vld [vmem:[#allocation2] sm:$0xf]
    %v41 = vld [vmem:[#allocation2 + $0x4] sm:$0xf]
    %v42 = vld [vmem:[#allocation5] sm:$0x1]
    %v43 = vld [vmem:[#allocation5 + $0x1] sm:$0x1]
    %v46 = vlaneseq
    %v47 = vshrl.u32 %v46, 7
    %v48 = vsub.s32 0, %v47
    %v49 = vrot.slane %v42, %v48
    %v50 = vlaneseq
    %v51 = vshrl.u32 %v50, 7
    %v52 = vsub.s32 0, %v51
    %v53 = vrot.slane %v43, %v52
    %v56 = vmul.f32 %v40, %v49
    %v57 = vmul.f32 %v41, %v53
    %vm58 = vcmask 125952
    %59 = vst.msk [vmem:[#allocation7] sm:$0xf] %vm58, %v56
    %60 = vst.msk [vmem:[#allocation7 + $0x4] sm:$0xf] %vm58, %v57
    // Predicated region
    $region18: #{tpu_custom_call.1} parent=1 // pred_check
      _
    $region19: #{tpu_custom_call.1} parent=1 // pred_check_branch
      %62 = sbr.rel (0) target = $region21
    $region20: #{tpu_custom_call.1} parent=1 // pred_region
      %s64 = ssub.s32 128, 128
      %65 = vsyncadd [#allocation4], %s64
      %s66 = sshll.u32 [#allocation7], 4
      %s67 = int_to_ptr.vmem [resolvable:$true] %s66
      %72 = dma.vmem_to_hbm [thread:$0]  %s67, 128, %s2, [#allocation4], 64, 64, 4
    $region21: #{tpu_custom_call.1} parent=1 // pred_fallthru
      _
    // Predicated region
    $region22: #{tpu_custom_call.1} parent=1 // pred_check
      _
    $region23: #{tpu_custom_call.1} parent=1 // pred_check_branch
      %74 = sbr.rel (0) target = $region25
    $region24: #{tpu_custom_call.1} parent=1 // pred_region
      %75 = dma.done [#allocation4], 128
    $region25: #{tpu_custom_call.1} parent=1 // pred_fallthru
      _
    %76 = vsyncpa [#allocation3], 1
    %77 = vsyncpa [#allocation6], 1
    %78 = vsyncpa [#allocation4], 1

</llo_original>
